<compile_context>
chip_gen: v6e
topology: v6e:2x2x1
jax: 0.10.0
libtpu: 0.0.40
codegen_flags: <defaults>
</compile_context>

<pallas_src>
import functools

import jax
import jax.numpy as jnp
import numpy as np
from jax.experimental import pallas as pl
from jax.experimental.pallas import tpu as pltpu


def rnn_kernel(xs_ref, w_ih_ref, w_hh_ref, w_out_ref, ys_ref,
               pre_ref, h_hist_ref, *, num_layers, seq_len, unroll):
    w_hh = w_hh_ref[...]
    n_hidden = w_hh.shape[0]

    # Hoisted input projection: one batched MXU matmul for all time steps.
    pre_ref[...] = jnp.dot(xs_ref[...], w_ih_ref[...],
                           preferred_element_type=jnp.float32)      # (T, H)

    def step(t, h):
        pre = pre_ref[pl.ds(t, 1), :]                                # (1, H)
        # num_layers applications of the same cell on this time step.
        # h starts at zero, so relu(pre + 0 @ w_hh) == relu(pre): the
        # PyTorch "state is None" branch is covered without a select.
        for _ in range(num_layers):
            h = jnp.maximum(
                pre + jnp.dot(h, w_hh, preferred_element_type=jnp.float32),
                0.0)
        h_hist_ref[pl.ds(t, 1), :] = h
        return h

    h0 = jnp.zeros((1, n_hidden), dtype=jnp.float32)
    jax.lax.fori_loop(0, seq_len, step, h0, unroll=unroll)

    # Hoisted output projection: one matmul + one dense full-block store.
    ys_ref[...] = jnp.dot(h_hist_ref[...], w_out_ref[...],
                          preferred_element_type=jnp.float32)        # (T, n_out)


def rnn_model_forward(xs, w_ih_t, w_hh_t, w_out_t, num_layers=1):
    T, n_input = xs.shape
    n_hidden = w_ih_t.shape[1]
    n_output = w_out_t.shape[1]

    # Fully unroll short sequences; partial unroll keeps compile time sane for
    # long ones while still giving the scheduler cross-step visibility.
    unroll = True if T <= 64 else 8

    kern = functools.partial(rnn_kernel, num_layers=num_layers,
                             seq_len=T, unroll=unroll)
    ys = pl.pallas_call(
        kern,
        out_shape=jax.ShapeDtypeStruct((T, n_output), jnp.float32),
        grid=(1,),
        in_specs=[
            pl.BlockSpec((T, n_input), lambda i: (0, 0)),
            pl.BlockSpec((n_input, n_hidden), lambda i: (0, 0)),
            pl.BlockSpec((n_hidden, n_hidden), lambda i: (0, 0)),
            pl.BlockSpec((n_hidden, n_output), lambda i: (0, 0)),
        ],
        out_specs=pl.BlockSpec((T, n_output), lambda i: (0, 0)),
        scratch_shapes=[
            pltpu.VMEM((T, n_hidden), jnp.float32),   # pre-activations x @ W_ih
            pltpu.VMEM((T, n_hidden), jnp.float32),   # hidden-state history
        ],
        compiler_params=pltpu.CompilerParams(
            dimension_semantics=("arbitrary",)),
    )(xs, w_ih_t, w_hh_t, w_out_t)
    # Stacking (T, 1, n_out) and transposing axes 0/1 == reshape for batch=1.
    return ys.reshape(1, T, n_output)


def rnn_model_reference(xs, w_ih_t, w_hh_t, w_out_t, num_layers=1):
    """Pure-JAX re-implementation of the PyTorch forward (for validation)."""
    state = None
    hs = []
    for t in range(xs.shape[0]):
        x = xs[t:t + 1]                                   # (1, n_in)
        for _ in range(num_layers):
            if state is None:
                state = jax.nn.relu(x @ w_ih_t)
            else:
                state = jax.nn.relu(x @ w_ih_t + state @ w_hh_t)
        hs.append(state)
    h = jnp.stack(hs)                                     # (T, 1, H)
    ys = h @ w_out_t                                      # (T, 1, n_out)
    return jnp.transpose(ys, (1, 0, 2))                   # (1, T, n_out)


if __name__ == "__main__":
    # Small shapes implied by the forward: xs is a sequence of n_input vectors.
    T, n_input, n_hidden, n_output = 8, 16, 32, 8

    key = jax.random.PRNGKey(0)
    k_xs, k_ih, k_hh, k_out = jax.random.split(key, 4)

    stdv = 1.0 / float(np.sqrt(n_hidden))
    xs = jax.random.normal(k_xs, (T, n_input), dtype=jnp.float32)
    # nn.Linear weights (bias=False), stored pre-transposed as (in, out):
    w_ih_t = jax.random.uniform(k_ih, (n_input, n_hidden),
                                minval=-stdv, maxval=stdv, dtype=jnp.float32)
    w_hh_t = jax.random.uniform(k_hh, (n_hidden, n_hidden),
                                minval=-stdv, maxval=stdv, dtype=jnp.float32)
    w_out_t = jax.random.uniform(k_out, (n_hidden, n_output),
                                 minval=-stdv, maxval=stdv, dtype=jnp.float32)

    for num_layers in (1, 2):
        ys = rnn_model_forward(xs, w_ih_t, w_hh_t, w_out_t,
                               num_layers=num_layers)
        ys = jax.block_until_ready(ys)
        ys_ref = rnn_model_reference(xs, w_ih_t, w_hh_t, w_out_t,
                                     num_layers=num_layers)
        assert ys.shape == (1, T, n_output), ys.shape
        np.testing.assert_allclose(np.asarray(ys), np.asarray(ys_ref),
                                   rtol=1e-5, atol=1e-5)

    print("KERNEL_OK")
</pallas_src>

<mosaic_0001>
module attributes {stable_mosaic.version = 11 : i64} {
  func.func @rnn_kernel(%arg0: i32, %arg1: memref<8x16xf32, #tpu.memory_space<vmem>>, %arg2: memref<16x32xf32, #tpu.memory_space<vmem>>, %arg3: memref<32x32xf32, #tpu.memory_space<vmem>>, %arg4: memref<32x8xf32, #tpu.memory_space<vmem>>, %arg5: memref<8x8xf32, #tpu.memory_space<vmem>>, %arg6: memref<8x32xf32, #tpu.memory_space<vmem>>, %arg7: memref<8x32xf32, #tpu.memory_space<vmem>>) attributes {dimension_semantics = [#tpu.dimension_semantics<arbitrary>], iteration_bounds = array<i64: 1>, scalar_prefetch = 0 : i64, scratch_operands = 2 : i64, tpu.core_type = #tpu.core_type<tc>, window_params = [{pipeline_mode = #tpu.pipeline_mode<synchronous>, transform_indices = @transform_0, window_bounds = array<i64: 8, 16>}, {pipeline_mode = #tpu.pipeline_mode<synchronous>, transform_indices = @transform_1, window_bounds = array<i64: 16, 32>}, {pipeline_mode = #tpu.pipeline_mode<synchronous>, transform_indices = @transform_2, window_bounds = array<i64: 32, 32>}, {pipeline_mode = #tpu.pipeline_mode<synchronous>, transform_indices = @transform_3, window_bounds = array<i64: 32, 8>}, {pipeline_mode = #tpu.pipeline_mode<synchronous>, transform_indices = @transform_4, window_bounds = array<i64: 8, 8>}]} {
    %c0 = arith.constant 0 : index
    %c0_0 = arith.constant 0 : index
    %0 = vector.load %arg3[%c0, %c0_0] : memref<32x32xf32, #tpu.memory_space<vmem>>, vector<32x32xf32>
    %c0_1 = arith.constant 0 : index
    %c0_2 = arith.constant 0 : index
    %1 = vector.load %arg1[%c0_1, %c0_2] : memref<8x16xf32, #tpu.memory_space<vmem>>, vector<8x16xf32>
    %c0_3 = arith.constant 0 : index
    %c0_4 = arith.constant 0 : index
    %2 = vector.load %arg2[%c0_3, %c0_4] : memref<16x32xf32, #tpu.memory_space<vmem>>, vector<16x32xf32>
    %cst = arith.constant dense<0.000000e+00> : vector<8x32xf32>
    %3 = tpu.matmul %1, %2, %cst {dimension_numbers = #tpu.dot_dimension_numbers<[1], [0], [0], [1], [0, 0, 1, 1], [], []>} : vector<8x16xf32>, vector<16x32xf32>, vector<8x32xf32> -> vector<8x32xf32>
    %c0_5 = arith.constant 0 : index
    %c0_6 = arith.constant 0 : index
    %4 = vector.load %arg6[%c0_5, %c0_6] : memref<8x32xf32, #tpu.memory_space<vmem>>, vector<8x32xf32>
    tpu.vector_store %arg6[%c0_5, %c0_6], %3 {strides = array<i32>} : memref<8x32xf32, #tpu.memory_space<vmem>>, vector<8x32xf32>,
    %cst_7 = arith.constant 0.000000e+00 : f32
    %5 = vector.broadcast %cst_7 : f32 to vector<1x32xf32>
    %c0_i32 = arith.constant 0 : i32
    %6 = arith.index_cast %c0_i32 : i32 to index
    %c0_8 = arith.constant 0 : index
    %7 = vector.load %arg6[%6, %c0_8] : memref<8x32xf32, #tpu.memory_space<vmem>>, vector<1x32xf32>
    %cst_9 = arith.constant dense<0.000000e+00> : vector<1x32xf32>
    %8 = tpu.matmul %5, %0, %cst_9 {dimension_numbers = #tpu.dot_dimension_numbers<[1], [0], [0], [1], [0, 0, 1, 1], [], []>} : vector<1x32xf32>, vector<32x32xf32>, vector<1x32xf32> -> vector<1x32xf32>
    %9 = arith.addf %7, %8 : vector<1x32xf32>
    %cst_10 = arith.constant 0.000000e+00 : f32
    %10 = vector.broadcast %cst_10 : f32 to vector<1x32xf32>
    %11 = arith.maximumf %9, %10 : vector<1x32xf32>
    %12 = arith.index_cast %c0_i32 : i32 to index
    %c0_11 = arith.constant 0 : index
    %13 = vector.load %arg7[%12, %c0_11] : memref<8x32xf32, #tpu.memory_space<vmem>>, vector<1x32xf32>
    tpu.vector_store %arg7[%12, %c0_11], %11 {strides = array<i32>} : memref<8x32xf32, #tpu.memory_space<vmem>>, vector<1x32xf32>,
    %c1_i32 = arith.constant 1 : i32
    %14 = arith.index_cast %c1_i32 : i32 to index
    %c0_12 = arith.constant 0 : index
    %15 = vector.load %arg6[%14, %c0_12] : memref<8x32xf32, #tpu.memory_space<vmem>>, vector<1x32xf32>
    %cst_13 = arith.constant dense<0.000000e+00> : vector<1x32xf32>
    %16 = tpu.matmul %11, %0, %cst_13 {dimension_numbers = #tpu.dot_dimension_numbers<[1], [0], [0], [1], [0, 0, 1, 1], [], []>} : vector<1x32xf32>, vector<32x32xf32>, vector<1x32xf32> -> vector<1x32xf32>
    %17 = arith.addf %15, %16 : vector<1x32xf32>
    %cst_14 = arith.constant 0.000000e+00 : f32
    %18 = vector.broadcast %cst_14 : f32 to vector<1x32xf32>
    %19 = arith.maximumf %17, %18 : vector<1x32xf32>
    %20 = arith.index_cast %c1_i32 : i32 to index
    %c0_15 = arith.constant 0 : index
    %21 = vector.load %arg7[%20, %c0_15] : memref<8x32xf32, #tpu.memory_space<vmem>>, vector<1x32xf32>
    tpu.vector_store %arg7[%20, %c0_15], %19 {strides = array<i32>} : memref<8x32xf32, #tpu.memory_space<vmem>>, vector<1x32xf32>,
    %c2_i32 = arith.constant 2 : i32
    %22 = arith.index_cast %c2_i32 : i32 to index
    %c0_16 = arith.constant 0 : index
    %23 = vector.load %arg6[%22, %c0_16] : memref<8x32xf32, #tpu.memory_space<vmem>>, vector<1x32xf32>
    %cst_17 = arith.constant dense<0.000000e+00> : vector<1x32xf32>
    %24 = tpu.matmul %19, %0, %cst_17 {dimension_numbers = #tpu.dot_dimension_numbers<[1], [0], [0], [1], [0, 0, 1, 1], [], []>} : vector<1x32xf32>, vector<32x32xf32>, vector<1x32xf32> -> vector<1x32xf32>
    %25 = arith.addf %23, %24 : vector<1x32xf32>
    %cst_18 = arith.constant 0.000000e+00 : f32
    %26 = vector.broadcast %cst_18 : f32 to vector<1x32xf32>
    %27 = arith.maximumf %25, %26 : vector<1x32xf32>
    %28 = arith.index_cast %c2_i32 : i32 to index
    %c0_19 = arith.constant 0 : index
    %29 = vector.load %arg7[%28, %c0_19] : memref<8x32xf32, #tpu.memory_space<vmem>>, vector<1x32xf32>
    tpu.vector_store %arg7[%28, %c0_19], %27 {strides = array<i32>} : memref<8x32xf32, #tpu.memory_space<vmem>>, vector<1x32xf32>,
    %c3_i32 = arith.constant 3 : i32
    %30 = arith.index_cast %c3_i32 : i32 to index
    %c0_20 = arith.constant 0 : index
    %31 = vector.load %arg6[%30, %c0_20] : memref<8x32xf32, #tpu.memory_space<vmem>>, vector<1x32xf32>
    %cst_21 = arith.constant dense<0.000000e+00> : vector<1x32xf32>
    %32 = tpu.matmul %27, %0, %cst_21 {dimension_numbers = #tpu.dot_dimension_numbers<[1], [0], [0], [1], [0, 0, 1, 1], [], []>} : vector<1x32xf32>, vector<32x32xf32>, vector<1x32xf32> -> vector<1x32xf32>
    %33 = arith.addf %31, %32 : vector<1x32xf32>
    %cst_22 = arith.constant 0.000000e+00 : f32
    %34 = vector.broadcast %cst_22 : f32 to vector<1x32xf32>
    %35 = arith.maximumf %33, %34 : vector<1x32xf32>
    %36 = arith.index_cast %c3_i32 : i32 to index
    %c0_23 = arith.constant 0 : index
    %37 = vector.load %arg7[%36, %c0_23] : memref<8x32xf32, #tpu.memory_space<vmem>>, vector<1x32xf32>
    tpu.vector_store %arg7[%36, %c0_23], %35 {strides = array<i32>} : memref<8x32xf32, #tpu.memory_space<vmem>>, vector<1x32xf32>,
    %c4_i32 = arith.constant 4 : i32
    %38 = arith.index_cast %c4_i32 : i32 to index
    %c0_24 = arith.constant 0 : index
    %39 = vector.load %arg6[%38, %c0_24] : memref<8x32xf32, #tpu.memory_space<vmem>>, vector<1x32xf32>
    %cst_25 = arith.constant dense<0.000000e+00> : vector<1x32xf32>
    %40 = tpu.matmul %35, %0, %cst_25 {dimension_numbers = #tpu.dot_dimension_numbers<[1], [0], [0], [1], [0, 0, 1, 1], [], []>} : vector<1x32xf32>, vector<32x32xf32>, vector<1x32xf32> -> vector<1x32xf32>
    %41 = arith.addf %39, %40 : vector<1x32xf32>
    %cst_26 = arith.constant 0.000000e+00 : f32
    %42 = vector.broadcast %cst_26 : f32 to vector<1x32xf32>
    %43 = arith.maximumf %41, %42 : vector<1x32xf32>
    %44 = arith.index_cast %c4_i32 : i32 to index
    %c0_27 = arith.constant 0 : index
    %45 = vector.load %arg7[%44, %c0_27] : memref<8x32xf32, #tpu.memory_space<vmem>>, vector<1x32xf32>
    tpu.vector_store %arg7[%44, %c0_27], %43 {strides = array<i32>} : memref<8x32xf32, #tpu.memory_space<vmem>>, vector<1x32xf32>,
    %c5_i32 = arith.constant 5 : i32
    %46 = arith.index_cast %c5_i32 : i32 to index
    %c0_28 = arith.constant 0 : index
    %47 = vector.load %arg6[%46, %c0_28] : memref<8x32xf32, #tpu.memory_space<vmem>>, vector<1x32xf32>
    %cst_29 = arith.constant dense<0.000000e+00> : vector<1x32xf32>
    %48 = tpu.matmul %43, %0, %cst_29 {dimension_numbers = #tpu.dot_dimension_numbers<[1], [0], [0], [1], [0, 0, 1, 1], [], []>} : vector<1x32xf32>, vector<32x32xf32>, vector<1x32xf32> -> vector<1x32xf32>
    %49 = arith.addf %47, %48 : vector<1x32xf32>
    %cst_30 = arith.constant 0.000000e+00 : f32
    %50 = vector.broadcast %cst_30 : f32 to vector<1x32xf32>
    %51 = arith.maximumf %49, %50 : vector<1x32xf32>
    %52 = arith.index_cast %c5_i32 : i32 to index
    %c0_31 = arith.constant 0 : index
    %53 = vector.load %arg7[%52, %c0_31] : memref<8x32xf32, #tpu.memory_space<vmem>>, vector<1x32xf32>
    tpu.vector_store %arg7[%52, %c0_31], %51 {strides = array<i32>} : memref<8x32xf32, #tpu.memory_space<vmem>>, vector<1x32xf32>,
    %c6_i32 = arith.constant 6 : i32
    %54 = arith.index_cast %c6_i32 : i32 to index
    %c0_32 = arith.constant 0 : index
    %55 = vector.load %arg6[%54, %c0_32] : memref<8x32xf32, #tpu.memory_space<vmem>>, vector<1x32xf32>
    %cst_33 = arith.constant dense<0.000000e+00> : vector<1x32xf32>
    %56 = tpu.matmul %51, %0, %cst_33 {dimension_numbers = #tpu.dot_dimension_numbers<[1], [0], [0], [1], [0, 0, 1, 1], [], []>} : vector<1x32xf32>, vector<32x32xf32>, vector<1x32xf32> -> vector<1x32xf32>
    %57 = arith.addf %55, %56 : vector<1x32xf32>
    %cst_34 = arith.constant 0.000000e+00 : f32
    %58 = vector.broadcast %cst_34 : f32 to vector<1x32xf32>
    %59 = arith.maximumf %57, %58 : vector<1x32xf32>
    %60 = arith.index_cast %c6_i32 : i32 to index
    %c0_35 = arith.constant 0 : index
    %61 = vector.load %arg7[%60, %c0_35] : memref<8x32xf32, #tpu.memory_space<vmem>>, vector<1x32xf32>
    tpu.vector_store %arg7[%60, %c0_35], %59 {strides = array<i32>} : memref<8x32xf32, #tpu.memory_space<vmem>>, vector<1x32xf32>,
    %c7_i32 = arith.constant 7 : i32
    %62 = arith.index_cast %c7_i32 : i32 to index
    %c0_36 = arith.constant 0 : index
    %63 = vector.load %arg6[%62, %c0_36] : memref<8x32xf32, #tpu.memory_space<vmem>>, vector<1x32xf32>
    %cst_37 = arith.constant dense<0.000000e+00> : vector<1x32xf32>
    %64 = tpu.matmul %59, %0, %cst_37 {dimension_numbers = #tpu.dot_dimension_numbers<[1], [0], [0], [1], [0, 0, 1, 1], [], []>} : vector<1x32xf32>, vector<32x32xf32>, vector<1x32xf32> -> vector<1x32xf32>
    %65 = arith.addf %63, %64 : vector<1x32xf32>
    %cst_38 = arith.constant 0.000000e+00 : f32
    %66 = vector.broadcast %cst_38 : f32 to vector<1x32xf32>
    %67 = arith.maximumf %65, %66 : vector<1x32xf32>
    %68 = arith.index_cast %c7_i32 : i32 to index
    %c0_39 = arith.constant 0 : index
    %69 = vector.load %arg7[%68, %c0_39] : memref<8x32xf32, #tpu.memory_space<vmem>>, vector<1x32xf32>
    tpu.vector_store %arg7[%68, %c0_39], %67 {strides = array<i32>} : memref<8x32xf32, #tpu.memory_space<vmem>>, vector<1x32xf32>,
    %c8_i32 = arith.constant 8 : i32
    %c0_40 = arith.constant 0 : index
    %c0_41 = arith.constant 0 : index
    %70 = vector.load %arg7[%c0_40, %c0_41] : memref<8x32xf32, #tpu.memory_space<vmem>>, vector<8x32xf32>
    %c0_42 = arith.constant 0 : index
    %c0_43 = arith.constant 0 : index
    %71 = vector.load %arg4[%c0_42, %c0_43] : memref<32x8xf32, #tpu.memory_space<vmem>>, vector<32x8xf32>
    %cst_44 = arith.constant dense<0.000000e+00> : vector<8x8xf32>
    %72 = tpu.matmul %70, %71, %cst_44 {dimension_numbers = #tpu.dot_dimension_numbers<[1], [0], [0], [1], [0, 0, 1, 1], [], []>} : vector<8x32xf32>, vector<32x8xf32>, vector<8x8xf32> -> vector<8x8xf32>
    %c0_45 = arith.constant 0 : index
    %c0_46 = arith.constant 0 : index
    %73 = vector.load %arg5[%c0_45, %c0_46] : memref<8x8xf32, #tpu.memory_space<vmem>>, vector<8x8xf32>
    tpu.vector_store %arg5[%c0_45, %c0_46], %72 {strides = array<i32>} : memref<8x8xf32, #tpu.memory_space<vmem>>, vector<8x8xf32>,
    return
  }
  func.func @transform_0(%arg0: i32) -> (i32, i32) {
    %c0_i32 = arith.constant 0 : i32
    %c0_i32_0 = arith.constant 0 : i32
    %c0_i32_1 = arith.constant 0 : i32
    return %c0_i32, %c0_i32_0 : i32, i32
  }
  func.func @transform_1(%arg0: i32) -> (i32, i32) {
    %c0_i32 = arith.constant 0 : i32
    %c0_i32_0 = arith.constant 0 : i32
    %c0_i32_1 = arith.constant 0 : i32
    return %c0_i32, %c0_i32_0 : i32, i32
  }
  func.func @transform_2(%arg0: i32) -> (i32, i32) {
    %c0_i32 = arith.constant 0 : i32
    %c0_i32_0 = arith.constant 0 : i32
    %c0_i32_1 = arith.constant 0 : i32
    return %c0_i32, %c0_i32_0 : i32, i32
  }
  func.func @transform_3(%arg0: i32) -> (i32, i32) {
    %c0_i32 = arith.constant 0 : i32
    %c0_i32_0 = arith.constant 0 : i32
    %c0_i32_1 = arith.constant 0 : i32
    return %c0_i32, %c0_i32_0 : i32, i32
  }
  func.func @transform_4(%arg0: i32) -> (i32, i32) {
    %c0_i32 = arith.constant 0 : i32
    %c0_i32_0 = arith.constant 0 : i32
    %c0_i32_1 = arith.constant 0 : i32
    return %c0_i32, %c0_i32_0 : i32, i32
  }
}

</mosaic_0001>

<llo_original>
// kernel: tpu_custom_call.1
$region0: #{tpu_custom_call.1}
  #allocation0 [shape = 'u32[]', space=smem, size = 0x4, offset = 0x4, fixed_abs, tag = 'smem constant byte address 0x4 - core index']
  #allocation1 [shape = 'u32[144,128]{1,0:T(1,128)}', space=vmem, size = 0x12000, scoped, tag = 'internal scratch']
  #allocation2 [shape = 'f32[8,32]{1,0:T(8,128)}', space=vmem, size = 0x1000, scoped, tag = 'scratch operand']
  #allocation3 [shape = 'f32[8,32]{1,0:T(8,128)}', space=vmem, size = 0x1000, scoped, tag = 'scratch operand']
  %s0 = inlined_call_operand.vmem [shape: f32[8,16], index: 0, kind: input, shape index: {}]
  %s1 = inlined_call_operand.hbm [shape: f32[16,32], index: 1, kind: input, shape index: {}]
  %s2 = inlined_call_operand.vmem [shape: f32[32,32], index: 2, kind: input, shape index: {}]
  %s3 = inlined_call_operand.vmem [shape: f32[32,8], index: 3, kind: input, shape index: {}]
  %s4 = inlined_call_operand.hbm [shape: f32[8,8], index: 4, kind: output, shape index: {}]
  %s5 = sld [smem:[#allocation0]]
  $region30: #{tpu_custom_call.1} parent=0
    _
  %s7 = ssub.s32 1, %s5
  %s8 = scalar_select 0, %s7, %s5
  $region1: #{tpu_custom_call.1} parent=0
    #allocation4 [shape = 'u8[8192]{0}', space=vmem, size = 0x2000, scoped, tag = 'input window, operand 1, single buffered']
    #allocation5 [shape = 's32[1]{0}', space=sflag, size = 0x4, scoped, tag = 'scoped memory for tpu_custom_call.1']
    #allocation6 [shape = 's32[1]{0}', space=sflag, size = 0x4, scoped, tag = 'scoped memory for tpu_custom_call.1']
    #allocation7 [shape = 'u8[4096]{0}', space=vmem, size = 0x1000, scoped, tag = 'output window, operand 0, single buffered']
    %9 = vsyncpa [#allocation5], 0
    %10 = vsyncpa [#allocation6], 0
    // Predicated region
    $region2: #{tpu_custom_call.1} parent=1 // pred_check
      _
    $region3: #{tpu_custom_call.1} parent=1 // pred_check_branch
      %12 = sbr.rel (0) target = $region5
    $region4: #{tpu_custom_call.1} parent=1 // pred_region
      _
    $region5: #{tpu_custom_call.1} parent=1 // pred_fallthru
      _
    // Predicated region
    $region6: #{tpu_custom_call.1} parent=1 // pred_check
      _
    $region7: #{tpu_custom_call.1} parent=1 // pred_check_branch
      %14 = sbr.rel (0) target = $region9
    $region8: #{tpu_custom_call.1} parent=1 // pred_region
      %s16 = ssub.s32 256, 256
      %17 = vsyncadd [#allocation5], %s16
      %s18 = sshll.u32 [#allocation4], 4
      %s19 = int_to_ptr.vmem [resolvable:$true] %s18
      %24 = dma.hbm_to_vmem [thread:$0]  %s1, 256, %s19, [#allocation5], 128, 128, 8
    $region9: #{tpu_custom_call.1} parent=1 // pred_fallthru
      _
    // Predicated region
    $region10: #{tpu_custom_call.1} parent=1 // pred_check
      _
    $region11: #{tpu_custom_call.1} parent=1 // pred_check_branch
      %26 = sbr.rel (0) target = $region13
    $region12: #{tpu_custom_call.1} parent=1 // pred_region
      _
    $region13: #{tpu_custom_call.1} parent=1 // pred_fallthru
      _
    // Predicated region
    $region14: #{tpu_custom_call.1} parent=1 // pred_check
      _
    $region15: #{tpu_custom_call.1} parent=1 // pred_check_branch
      %28 = sbr.rel (0) target = $region17
    $region16: #{tpu_custom_call.1} parent=1 // pred_region
      _
    $region17: #{tpu_custom_call.1} parent=1 // pred_fallthru
      _
    // Predicated region
    $region18: #{tpu_custom_call.1} parent=1 // pred_check
      _
    $region19: #{tpu_custom_call.1} parent=1 // pred_check_branch
      %30 = sbr.rel (0) target = $region21
    $region20: #{tpu_custom_call.1} parent=1 // pred_region
      %31 = dma.done [#allocation5], 256
    $region21: #{tpu_custom_call.1} parent=1 // pred_fallthru
      _
    %v32 = vld [vmem:[%s2] sm:$0xff]
    %v33 = vld [vmem:[%s2 + $0x8] sm:$0xff]
    %v34 = vld [vmem:[%s2 + $0x10] sm:$0xff]
    %v35 = vld [vmem:[%s2 + $0x18] sm:$0xff]
    %v36 = vld [vmem:[%s0] sm:$0xff]
    %v37 = vld [vmem:[#allocation4] sm:$0xff]
    %v38 = vld [vmem:[#allocation4 + $0x8] sm:$0xff]
    %vm39 = vcmask 130048
    %v41 = vsel %vm39, %v36, 0
    %43 = vmatprep.subr.mxu0 0.0
    %44 = vmatpush1.msra.mxu0 0.0
    %45 = vmatprep.subr.mxu0 0.0
    %46 = vmatpush1.msra.mxu0 0.0
    %47 = vmatprep.subr.mxu0 0.0
    %48 = vmatpush1.msra.mxu0 0.0
    %49 = vmatprep.subr.mxu0 0.0
    %50 = vmatpush1.msra.mxu0 0.0
    %51 = vmatprep.subr.mxu0 0.0
    %52 = vmatpush1.msra.mxu0 0.0
    %53 = vmatprep.subr.mxu0 0.0
    %54 = vmatpush1.msra.mxu0 0.0
    %55 = vmatprep.subr.mxu0 0.0
    %56 = vmatpush1.msra.mxu0 0.0
    %57 = vmatprep.subr.mxu0 0.0
    %58 = vmatpush1.msra.mxu0 0.0
    %59 = vmatprep.subr.mxu0 0.0
    %60 = vmatpush1.msra.mxu0 0.0
    %61 = vmatprep.subr.mxu0 0.0
    %62 = vmatpush1.msra.mxu0 0.0
    %63 = vmatprep.subr.mxu0 0.0
    %64 = vmatpush1.msra.mxu0 0.0
    %65 = vmatprep.subr.mxu0 0.0
    %66 = vmatpush1.msra.mxu0 0.0
    %67 = vmatprep.subr.mxu0 0.0
    %68 = vmatpush1.msra.mxu0 0.0
    %69 = vmatprep.subr.mxu0 0.0
    %70 = vmatpush1.msra.mxu0 0.0
    %71 = vmatprep.subr.mxu0 0.0
    %72 = vmatpush1.msra.mxu0 %v38
    %73 = vmatprep.subr.mxu0 0.0
    %74 = vmatpush1.msra.mxu0 %v37
    %75 = vmatprep.subr.mxu0 0.0
    %76 = vmatpush2.msra.mxu0 0.0
    %77 = vmatprep.subr.mxu0 0.0
    %78 = vmatpush2.msra.mxu0 0.0
    %79 = vmatprep.subr.mxu0 0.0
    %80 = vmatpush2.msra.mxu0 0.0
    %81 = vmatprep.subr.mxu0 0.0
    %82 = vmatpush2.msra.mxu0 0.0
    %83 = vmatprep.subr.mxu0 0.0
    %84 = vmatpush2.msra.mxu0 0.0
    %85 = vmatprep.subr.mxu0 0.0
    %86 = vmatpush2.msra.mxu0 0.0
    %87 = vmatprep.subr.mxu0 0.0
    %88 = vmatpush2.msra.mxu0 0.0
    %89 = vmatprep.subr.mxu0 0.0
    %90 = vmatpush2.msra.mxu0 0.0
    %91 = vmatprep.subr.mxu0 0.0
    %92 = vmatpush2.msra.mxu0 0.0
    %93 = vmatprep.subr.mxu0 0.0
    %94 = vmatpush2.msra.mxu0 0.0
    %95 = vmatprep.subr.mxu0 0.0
    %96 = vmatpush2.msra.mxu0 0.0
    %97 = vmatprep.subr.mxu0 0.0
    %98 = vmatpush2.msra.mxu0 0.0
    %99 = vmatprep.subr.mxu0 0.0
    %100 = vmatpush2.msra.mxu0 0.0
    %101 = vmatprep.subr.mxu0 0.0
    %102 = vmatpush2.msra.mxu0 0.0
    %103 = vmatprep.subr.mxu0 0.0
    %104 = vmatpush2.msra.mxu0 0.0
    %105 = vmatprep.subr.mxu0 0.0
    %106 = vmatpush2.msra.mxu0 0.0
    %107 = vmatprep.mubr.f32.mxu0 0.0
    %108 = vmatmul.mubr.f32.gmra.mxu0 %v41
    %v109 = vpop.f32.mrf.mxu0
    %v110 = vadd.f32 0.0, %v109
    %v111 = vpop.f32.mrf.mxu0
    %112 = vdwg.mxu0
    %vm113 = vcmask 261120
    %114 = vst.msk [vmem:[#allocation2] sm:$0xff] %vm113, %v110
    %v115 = vld [vmem:[#allocation2] sm:$0x1]
    %v117 = vsel %vm113, 0.0, 0
    %119 = vmatprep.subr.mxu0 0.0
    %120 = vmatpush1.msra.mxu0 0.0
    %121 = vmatprep.subr.mxu0 0.0
    %122 = vmatpush1.msra.mxu0 0.0
    %123 = vmatprep.subr.mxu0 0.0
    %124 = vmatpush1.msra.mxu0 0.0
    %125 = vmatprep.subr.mxu0 0.0
    %126 = vmatpush1.msra.mxu0 0.0
    %127 = vmatprep.subr.mxu0 0.0
    %128 = vmatpush1.msra.mxu0 0.0
    %129 = vmatprep.subr.mxu0 0.0
    %130 = vmatpush1.msra.mxu0 0.0
    %131 = vmatprep.subr.mxu0 0.0
    %132 = vmatpush1.msra.mxu0 0.0
    %133 = vmatprep.subr.mxu0 0.0
    %134 = vmatpush1.msra.mxu0 0.0
    %135 = vmatprep.subr.mxu0 0.0
    %136 = vmatpush1.msra.mxu0 0.0
    %137 = vmatprep.subr.mxu0 0.0
    %138 = vmatpush1.msra.mxu0 0.0
    %139 = vmatprep.subr.mxu0 0.0
    %140 = vmatpush1.msra.mxu0 0.0
    %141 = vmatprep.subr.mxu0 0.0
    %142 = vmatpush1.msra.mxu0 0.0
    %143 = vmatprep.subr.mxu0 0.0
    %144 = vmatpush1.msra.mxu0 %v35
    %145 = vmatprep.subr.mxu0 0.0
    %146 = vmatpush1.msra.mxu0 %v34
    %147 = vmatprep.subr.mxu0 0.0
    %148 = vmatpush1.msra.mxu0 %v33
    %149 = vmatprep.subr.mxu0 0.0
    %150 = vmatpush1.msra.mxu0 %v32
    %151 = vmatprep.subr.mxu0 0.0
    %152 = vmatpush2.msra.mxu0 0.0
    %153 = vmatprep.subr.mxu0 0.0
    %154 = vmatpush2.msra.mxu0 0.0
    %155 = vmatprep.subr.mxu0 0.0
    %156 = vmatpush2.msra.mxu0 0.0
    %157 = vmatprep.subr.mxu0 0.0
    %158 = vmatpush2.msra.mxu0 0.0
    %159 = vmatprep.subr.mxu0 0.0
    %160 = vmatpush2.msra.mxu0 0.0
    %161 = vmatprep.subr.mxu0 0.0
    %162 = vmatpush2.msra.mxu0 0.0
    %163 = vmatprep.subr.mxu0 0.0
    %164 = vmatpush2.msra.mxu0 0.0
    %165 = vmatprep.subr.mxu0 0.0
    %166 = vmatpush2.msra.mxu0 0.0
    %167 = vmatprep.subr.mxu0 0.0
    %168 = vmatpush2.msra.mxu0 0.0
    %169 = vmatprep.subr.mxu0 0.0
    %170 = vmatpush2.msra.mxu0 0.0
    %171 = vmatprep.subr.mxu0 0.0
    %172 = vmatpush2.msra.mxu0 0.0
    %173 = vmatprep.subr.mxu0 0.0
    %174 = vmatpush2.msra.mxu0 0.0
    %175 = vmatprep.subr.mxu0 0.0
    %176 = vmatpush2.msra.mxu0 0.0
    %177 = vmatprep.subr.mxu0 0.0
    %178 = vmatpush2.msra.mxu0 0.0
    %179 = vmatprep.subr.mxu0 0.0
    %180 = vmatpush2.msra.mxu0 0.0
    %181 = vmatprep.subr.mxu0 0.0
    %182 = vmatpush2.msra.mxu0 0.0
    %183 = vmatprep.mubr.f32.mxu0 0.0
    %184 = vmatmul.mubr.f32.gmra.mxu0 %v117
    %v185 = vpop.f32.mrf.mxu0
    %v186 = vadd.f32 0.0, %v185
    %v187 = vpop.f32.mrf.mxu0
    %188 = vdwg.mxu0
    %v189 = vadd.f32 %v115, %v186
    %v190 = vmax.f32 %v189, 0.0
    %vm191 = vcmask 253952
    %192 = vst.msk [vmem:[#allocation3] sm:$0x1] %vm191, %v190
    %v193 = vld [vmem:[#allocation2 + $0x1] sm:$0x1]
    %v195 = vsel %vm113, %v190, 0
    %197 = vmatprep.subr.mxu0 0.0
    %198 = vmatpush1.msra.mxu0 0.0
    %199 = vmatprep.subr.mxu0 0.0
    %200 = vmatpush1.msra.mxu0 0.0
    %201 = vmatprep.subr.mxu0 0.0
    %202 = vmatpush1.msra.mxu0 0.0
    %203 = vmatprep.subr.mxu0 0.0
    %204 = vmatpush1.msra.mxu0 0.0
    %205 = vmatprep.subr.mxu0 0.0
    %206 = vmatpush1.msra.mxu0 0.0
    %207 = vmatprep.subr.mxu0 0.0
    %208 = vmatpush1.msra.mxu0 0.0
    %209 = vmatprep.subr.mxu0 0.0
    %210 = vmatpush1.msra.mxu0 0.0
    %211 = vmatprep.subr.mxu0 0.0
    %212 = vmatpush1.msra.mxu0 0.0
    %213 = vmatprep.subr.mxu0 0.0
    %214 = vmatpush1.msra.mxu0 0.0
    %215 = vmatprep.subr.mxu0 0.0
    %216 = vmatpush1.msra.mxu0 0.0
    %217 = vmatprep.subr.mxu0 0.0
    %218 = vmatpush1.msra.mxu0 0.0
    %219 = vmatprep.subr.mxu0 0.0
    %220 = vmatpush1.msra.mxu0 0.0
    %221 = vmatprep.subr.mxu0 0.0
    %222 = vmatpush1.msra.mxu0 %v35
    %223 = vmatprep.subr.mxu0 0.0
    %224 = vmatpush1.msra.mxu0 %v34
    %225 = vmatprep.subr.mxu0 0.0
    %226 = vmatpush1.msra.mxu0 %v33
    %227 = vmatprep.subr.mxu0 0.0
    %228 = vmatpush1.msra.mxu0 %v32
    %229 = vmatprep.subr.mxu0 0.0
    %230 = vmatpush2.msra.mxu0 0.0
    %231 = vmatprep.subr.mxu0 0.0
    %232 = vmatpush2.msra.mxu0 0.0
    %233 = vmatprep.subr.mxu0 0.0
    %234 = vmatpush2.msra.mxu0 0.0
    %235 = vmatprep.subr.mxu0 0.0
    %236 = vmatpush2.msra.mxu0 0.0
    %237 = vmatprep.subr.mxu0 0.0
    %238 = vmatpush2.msra.mxu0 0.0
    %239 = vmatprep.subr.mxu0 0.0
    %240 = vmatpush2.msra.mxu0 0.0
    %241 = vmatprep.subr.mxu0 0.0
    %242 = vmatpush2.msra.mxu0 0.0
    %243 = vmatprep.subr.mxu0 0.0
    %244 = vmatpush2.msra.mxu0 0.0
    %245 = vmatprep.subr.mxu0 0.0
    %246 = vmatpush2.msra.mxu0 0.0
    %247 = vmatprep.subr.mxu0 0.0
    %248 = vmatpush2.msra.mxu0 0.0
    %249 = vmatprep.subr.mxu0 0.0
    %250 = vmatpush2.msra.mxu0 0.0
    %251 = vmatprep.subr.mxu0 0.0
    %252 = vmatpush2.msra.mxu0 0.0
    %253 = vmatprep.subr.mxu0 0.0
    %254 = vmatpush2.msra.mxu0 0.0
    %255 = vmatprep.subr.mxu0 0.0
    %256 = vmatpush2.msra.mxu0 0.0
    %257 = vmatprep.subr.mxu0 0.0
    %258 = vmatpush2.msra.mxu0 0.0
    %259 = vmatprep.subr.mxu0 0.0
    %260 = vmatpush2.msra.mxu0 0.0
    %261 = vmatprep.mubr.f32.mxu0 0.0
    %262 = vmatmul.mubr.f32.gmra.mxu0 %v195
    %v263 = vpop.f32.mrf.mxu0
    %v264 = vadd.f32 0.0, %v263
    %v265 = vpop.f32.mrf.mxu0
    %266 = vdwg.mxu0
    %v267 = vadd.f32 %v193, %v264
    %v268 = vmax.f32 %v267, 0.0
    %269 = vst.msk [vmem:[#allocation3 + $0x1] sm:$0x1] %vm191, %v268
    %v270 = vld [vmem:[#allocation2 + $0x2] sm:$0x1]
    %v272 = vsel %vm113, %v268, 0
    %274 = vmatprep.subr.mxu0 0.0
    %275 = vmatpush1.msra.mxu0 0.0
    %276 = vmatprep.subr.mxu0 0.0
    %277 = vmatpush1.msra.mxu0 0.0
    %278 = vmatprep.subr.mxu0 0.0
    %279 = vmatpush1.msra.mxu0 0.0
    %280 = vmatprep.subr.mxu0 0.0
    %281 = vmatpush1.msra.mxu0 0.0
    %282 = vmatprep.subr.mxu0 0.0
    %283 = vmatpush1.msra.mxu0 0.0
    %284 = vmatprep.subr.mxu0 0.0
    %285 = vmatpush1.msra.mxu0 0.0
    %286 = vmatprep.subr.mxu0 0.0
    %287 = vmatpush1.msra.mxu0 0.0
    %288 = vmatprep.subr.mxu0 0.0
    %289 = vmatpush1.msra.mxu0 0.0
    %290 = vmatprep.subr.mxu0 0.0
    %291 = vmatpush1.msra.mxu0 0.0
    %292 = vmatprep.subr.mxu0 0.0
    %293 = vmatpush1.msra.mxu0 0.0
    %294 = vmatprep.subr.mxu0 0.0
    %295 = vmatpush1.msra.mxu0 0.0
    %296 = vmatprep.subr.mxu0 0.0
    %297 = vmatpush1.msra.mxu0 0.0
    %298 = vmatprep.subr.mxu0 0.0
    %299 = vmatpush1.msra.mxu0 %v35
    %300 = vmatprep.subr.mxu0 0.0
    %301 = vmatpush1.msra.mxu0 %v34
    %302 = vmatprep.subr.mxu0 0.0
    %303 = vmatpush1.msra.mxu0 %v33
    %304 = vmatprep.subr.mxu0 0.0
    %305 = vmatpush1.msra.mxu0 %v32
    %306 = vmatprep.subr.mxu0 0.0
    %307 = vmatpush2.msra.mxu0 0.0
    %308 = vmatprep.subr.mxu0 0.0
    %309 = vmatpush2.msra.mxu0 0.0
    %310 = vmatprep.subr.mxu0 0.0
    %311 = vmatpush2.msra.mxu0 0.0
    %312 = vmatprep.subr.mxu0 0.0
    %313 = vmatpush2.msra.mxu0 0.0
    %314 = vmatprep.subr.mxu0 0.0
    %315 = vmatpush2.msra.mxu0 0.0
    %316 = vmatprep.subr.mxu0 0.0
    %317 = vmatpush2.msra.mxu0 0.0
    %318 = vmatprep.subr.mxu0 0.0
    %319 = vmatpush2.msra.mxu0 0.0
    %320 = vmatprep.subr.mxu0 0.0
    %321 = vmatpush2.msra.mxu0 0.0
    %322 = vmatprep.subr.mxu0 0.0
    %323 = vmatpush2.msra.mxu0 0.0
    %324 = vmatprep.subr.mxu0 0.0
    %325 = vmatpush2.msra.mxu0 0.0
    %326 = vmatprep.subr.mxu0 0.0
    %327 = vmatpush2.msra.mxu0 0.0
    %328 = vmatprep.subr.mxu0 0.0
    %329 = vmatpush2.msra.mxu0 0.0
    %330 = vmatprep.subr.mxu0 0.0
    %331 = vmatpush2.msra.mxu0 0.0
    %332 = vmatprep.subr.mxu0 0.0
    %333 = vmatpush2.msra.mxu0 0.0
    %334 = vmatprep.subr.mxu0 0.0
    %335 = vmatpush2.msra.mxu0 0.0
    %336 = vmatprep.subr.mxu0 0.0
    %337 = vmatpush2.msra.mxu0 0.0
    %338 = vmatprep.mubr.f32.mxu0 0.0
    %339 = vmatmul.mubr.f32.gmra.mxu0 %v272
    %v340 = vpop.f32.mrf.mxu0
    %v341 = vadd.f32 0.0, %v340
    %v342 = vpop.f32.mrf.mxu0
    %343 = vdwg.mxu0
    %v344 = vadd.f32 %v270, %v341
    %v345 = vmax.f32 %v344, 0.0
    %346 = vst.msk [vmem:[#allocation3 + $0x2] sm:$0x1] %vm191, %v345
    %v347 = vld [vmem:[#allocation2 + $0x3] sm:$0x1]
    %v349 = vsel %vm113, %v345, 0
    %351 = vmatprep.subr.mxu0 0.0
    %352 = vmatpush1.msra.mxu0 0.0
    %353 = vmatprep.subr.mxu0 0.0
    %354 = vmatpush1.msra.mxu0 0.0
    %355 = vmatprep.subr.mxu0 0.0
    %356 = vmatpush1.msra.mxu0 0.0
    %357 = vmatprep.subr.mxu0 0.0
    %358 = vmatpush1.msra.mxu0 0.0
    %359 = vmatprep.subr.mxu0 0.0
    %360 = vmatpush1.msra.mxu0 0.0
    %361 = vmatprep.subr.mxu0 0.0
    %362 = vmatpush1.msra.mxu0 0.0
    %363 = vmatprep.subr.mxu0 0.0
    %364 = vmatpush1.msra.mxu0 0.0
    %365 = vmatprep.subr.mxu0 0.0
    %366 = vmatpush1.msra.mxu0 0.0
    %367 = vmatprep.subr.mxu0 0.0
    %368 = vmatpush1.msra.mxu0 0.0
    %369 = vmatprep.subr.mxu0 0.0
    %370 = vmatpush1.msra.mxu0 0.0
    %371 = vmatprep.subr.mxu0 0.0
    %372 = vmatpush1.msra.mxu0 0.0
    %373 = vmatprep.subr.mxu0 0.0
    %374 = vmatpush1.msra.mxu0 0.0
    %375 = vmatprep.subr.mxu0 0.0
    %376 = vmatpush1.msra.mxu0 %v35
    %377 = vmatprep.subr.mxu0 0.0
    %378 = vmatpush1.msra.mxu0 %v34
    %379 = vmatprep.subr.mxu0 0.0
    %380 = vmatpush1.msra.mxu0 %v33
    %381 = vmatprep.subr.mxu0 0.0
    %382 = vmatpush1.msra.mxu0 %v32
    %383 = vmatprep.subr.mxu0 0.0
    %384 = vmatpush2.msra.mxu0 0.0
    %385 = vmatprep.subr.mxu0 0.0
    %386 = vmatpush2.msra.mxu0 0.0
    %387 = vmatprep.subr.mxu0 0.0
    %388 = vmatpush2.msra.mxu0 0.0
    %389 = vmatprep.subr.mxu0 0.0
    %390 = vmatpush2.msra.mxu0 0.0
    %391 = vmatprep.subr.mxu0 0.0
    %392 = vmatpush2.msra.mxu0 0.0
    %393 = vmatprep.subr.mxu0 0.0
    %394 = vmatpush2.msra.mxu0 0.0
    %395 = vmatprep.subr.mxu0 0.0
    %396 = vmatpush2.msra.mxu0 0.0
    %397 = vmatprep.subr.mxu0 0.0
    %398 = vmatpush2.msra.mxu0 0.0
    %399 = vmatprep.subr.mxu0 0.0
    %400 = vmatpush2.msra.mxu0 0.0
    %401 = vmatprep.subr.mxu0 0.0
    %402 = vmatpush2.msra.mxu0 0.0
    %403 = vmatprep.subr.mxu0 0.0
    %404 = vmatpush2.msra.mxu0 0.0
    %405 = vmatprep.subr.mxu0 0.0
    %406 = vmatpush2.msra.mxu0 0.0
    %407 = vmatprep.subr.mxu0 0.0
    %408 = vmatpush2.msra.mxu0 0.0
    %409 = vmatprep.subr.mxu0 0.0
    %410 = vmatpush2.msra.mxu0 0.0
    %411 = vmatprep.subr.mxu0 0.0
    %412 = vmatpush2.msra.mxu0 0.0
    %413 = vmatprep.subr.mxu0 0.0
    %414 = vmatpush2.msra.mxu0 0.0
    %415 = vmatprep.mubr.f32.mxu0 0.0
    %416 = vmatmul.mubr.f32.gmra.mxu0 %v349
    %v417 = vpop.f32.mrf.mxu0
    %v418 = vadd.f32 0.0, %v417
    %v419 = vpop.f32.mrf.mxu0
    %420 = vdwg.mxu0
    %v421 = vadd.f32 %v347, %v418
    %v422 = vmax.f32 %v421, 0.0
    %423 = vst.msk [vmem:[#allocation3 + $0x3] sm:$0x1] %vm191, %v422
    %v424 = vld [vmem:[#allocation2 + $0x4] sm:$0x1]
    %v426 = vsel %vm113, %v422, 0
    %428 = vmatprep.subr.mxu0 0.0
    %429 = vmatpush1.msra.mxu0 0.0
    %430 = vmatprep.subr.mxu0 0.0
    %431 = vmatpush1.msra.mxu0 0.0
    %432 = vmatprep.subr.mxu0 0.0
    %433 = vmatpush1.msra.mxu0 0.0
    %434 = vmatprep.subr.mxu0 0.0
    %435 = vmatpush1.msra.mxu0 0.0
    %436 = vmatprep.subr.mxu0 0.0
    %437 = vmatpush1.msra.mxu0 0.0
    %438 = vmatprep.subr.mxu0 0.0
    %439 = vmatpush1.msra.mxu0 0.0
    %440 = vmatprep.subr.mxu0 0.0
    %441 = vmatpush1.msra.mxu0 0.0
    %442 = vmatprep.subr.mxu0 0.0
    %443 = vmatpush1.msra.mxu0 0.0
    %444 = vmatprep.subr.mxu0 0.0
    %445 = vmatpush1.msra.mxu0 0.0
    %446 = vmatprep.subr.mxu0 0.0
    %447 = vmatpush1.msra.mxu0 0.0
    %448 = vmatprep.subr.mxu0 0.0
    %449 = vmatpush1.msra.mxu0 0.0
    %450 = vmatprep.subr.mxu0 0.0
    %451 = vmatpush1.msra.mxu0 0.0
    %452 = vmatprep.subr.mxu0 0.0
    %453 = vmatpush1.msra.mxu0 %v35
    %454 = vmatprep.subr.mxu0 0.0
    %455 = vmatpush1.msra.mxu0 %v34
    %456 = vmatprep.subr.mxu0 0.0
    %457 = vmatpush1.msra.mxu0 %v33
    %458 = vmatprep.subr.mxu0 0.0
    %459 = vmatpush1.msra.mxu0 %v32
    %460 = vmatprep.subr.mxu0 0.0
    %461 = vmatpush2.msra.mxu0 0.0
    %462 = vmatprep.subr.mxu0 0.0
    %463 = vmatpush2.msra.mxu0 0.0
    %464 = vmatprep.subr.mxu0 0.0
    %465 = vmatpush2.msra.mxu0 0.0
    %466 = vmatprep.subr.mxu0 0.0
    %467 = vmatpush2.msra.mxu0 0.0
    %468 = vmatprep.subr.mxu0 0.0
    %469 = vmatpush2.msra.mxu0 0.0
    %470 = vmatprep.subr.mxu0 0.0
    %471 = vmatpush2.msra.mxu0 0.0
    %472 = vmatprep.subr.mxu0 0.0
    %473 = vmatpush2.msra.mxu0 0.0
    %474 = vmatprep.subr.mxu0 0.0
    %475 = vmatpush2.msra.mxu0 0.0
    %476 = vmatprep.subr.mxu0 0.0
    %477 = vmatpush2.msra.mxu0 0.0
    %478 = vmatprep.subr.mxu0 0.0
    %479 = vmatpush2.msra.mxu0 0.0
    %480 = vmatprep.subr.mxu0 0.0
    %481 = vmatpush2.msra.mxu0 0.0
    %482 = vmatprep.subr.mxu0 0.0
    %483 = vmatpush2.msra.mxu0 0.0
    %484 = vmatprep.subr.mxu0 0.0
    %485 = vmatpush2.msra.mxu0 0.0
    %486 = vmatprep.subr.mxu0 0.0
    %487 = vmatpush2.msra.mxu0 0.0
    %488 = vmatprep.subr.mxu0 0.0
    %489 = vmatpush2.msra.mxu0 0.0
    %490 = vmatprep.subr.mxu0 0.0
    %491 = vmatpush2.msra.mxu0 0.0
    %492 = vmatprep.mubr.f32.mxu0 0.0
    %493 = vmatmul.mubr.f32.gmra.mxu0 %v426
    %v494 = vpop.f32.mrf.mxu0
    %v495 = vadd.f32 0.0, %v494
    %v496 = vpop.f32.mrf.mxu0
    %497 = vdwg.mxu0
    %v498 = vadd.f32 %v424, %v495
    %v499 = vmax.f32 %v498, 0.0
    %500 = vst.msk [vmem:[#allocation3 + $0x4] sm:$0x1] %vm191, %v499
    %v501 = vld [vmem:[#allocation2 + $0x5] sm:$0x1]
    %v503 = vsel %vm113, %v499, 0
    %505 = vmatprep.subr.mxu0 0.0
    %506 = vmatpush1.msra.mxu0 0.0
    %507 = vmatprep.subr.mxu0 0.0
    %508 = vmatpush1.msra.mxu0 0.0
    %509 = vmatprep.subr.mxu0 0.0
    %510 = vmatpush1.msra.mxu0 0.0
    %511 = vmatprep.subr.mxu0 0.0
    %512 = vmatpush1.msra.mxu0 0.0
    %513 = vmatprep.subr.mxu0 0.0
    %514 = vmatpush1.msra.mxu0 0.0
    %515 = vmatprep.subr.mxu0 0.0
    %516 = vmatpush1.msra.mxu0 0.0
    %517 = vmatprep.subr.mxu0 0.0
    %518 = vmatpush1.msra.mxu0 0.0
    %519 = vmatprep.subr.mxu0 0.0
    %520 = vmatpush1.msra.mxu0 0.0
    %521 = vmatprep.subr.mxu0 0.0
    %522 = vmatpush1.msra.mxu0 0.0
    %523 = vmatprep.subr.mxu0 0.0
    %524 = vmatpush1.msra.mxu0 0.0
    %525 = vmatprep.subr.mxu0 0.0
    %526 = vmatpush1.msra.mxu0 0.0
    %527 = vmatprep.subr.mxu0 0.0
    %528 = vmatpush1.msra.mxu0 0.0
    %529 = vmatprep.subr.mxu0 0.0
    %530 = vmatpush1.msra.mxu0 %v35
    %531 = vmatprep.subr.mxu0 0.0
    %532 = vmatpush1.msra.mxu0 %v34
    %533 = vmatprep.subr.mxu0 0.0
    %534 = vmatpush1.msra.mxu0 %v33
    %535 = vmatprep.subr.mxu0 0.0
    %536 = vmatpush1.msra.mxu0 %v32
    %537 = vmatprep.subr.mxu0 0.0
    %538 = vmatpush2.msra.mxu0 0.0
    %539 = vmatprep.subr.mxu0 0.0
    %540 = vmatpush2.msra.mxu0 0.0
    %541 = vmatprep.subr.mxu0 0.0
    %542 = vmatpush2.msra.mxu0 0.0
    %543 = vmatprep.subr.mxu0 0.0
    %544 = vmatpush2.msra.mxu0 0.0
    %545 = vmatprep.subr.mxu0 0.0
    %546 = vmatpush2.msra.mxu0 0.0
    %547 = vmatprep.subr.mxu0 0.0
    %548 = vmatpush2.msra.mxu0 0.0
    %549 = vmatprep.subr.mxu0 0.0
    %550 = vmatpush2.msra.mxu0 0.0
    %551 = vmatprep.subr.mxu0 0.0
    %552 = vmatpush2.msra.mxu0 0.0
    %553 = vmatprep.subr.mxu0 0.0
    %554 = vmatpush2.msra.mxu0 0.0
    %555 = vmatprep.subr.mxu0 0.0
    %556 = vmatpush2.msra.mxu0 0.0
    %557 = vmatprep.subr.mxu0 0.0
    %558 = vmatpush2.msra.mxu0 0.0
    %559 = vmatprep.subr.mxu0 0.0
    %560 = vmatpush2.msra.mxu0 0.0
    %561 = vmatprep.subr.mxu0 0.0
    %562 = vmatpush2.msra.mxu0 0.0
    %563 = vmatprep.subr.mxu0 0.0
    %564 = vmatpush2.msra.mxu0 0.0
    %565 = vmatprep.subr.mxu0 0.0
    %566 = vmatpush2.msra.mxu0 0.0
    %567 = vmatprep.subr.mxu0 0.0
    %568 = vmatpush2.msra.mxu0 0.0
    %569 = vmatprep.mubr.f32.mxu0 0.0
    %570 = vmatmul.mubr.f32.gmra.mxu0 %v503
    %v571 = vpop.f32.mrf.mxu0
    %v572 = vadd.f32 0.0, %v571
    %v573 = vpop.f32.mrf.mxu0
    %574 = vdwg.mxu0
    %v575 = vadd.f32 %v501, %v572
    %v576 = vmax.f32 %v575, 0.0
    %577 = vst.msk [vmem:[#allocation3 + $0x5] sm:$0x1] %vm191, %v576
    %v578 = vld [vmem:[#allocation2 + $0x6] sm:$0x1]
    %v580 = vsel %vm113, %v576, 0
    %582 = vmatprep.subr.mxu0 0.0
    %583 = vmatpush1.msra.mxu0 0.0
    %584 = vmatprep.subr.mxu0 0.0
    %585 = vmatpush1.msra.mxu0 0.0
    %586 = vmatprep.subr.mxu0 0.0
    %587 = vmatpush1.msra.mxu0 0.0
    %588 = vmatprep.subr.mxu0 0.0
    %589 = vmatpush1.msra.mxu0 0.0
    %590 = vmatprep.subr.mxu0 0.0
    %591 = vmatpush1.msra.mxu0 0.0
    %592 = vmatprep.subr.mxu0 0.0
    %593 = vmatpush1.msra.mxu0 0.0
    %594 = vmatprep.subr.mxu0 0.0
    %595 = vmatpush1.msra.mxu0 0.0
    %596 = vmatprep.subr.mxu0 0.0
    %597 = vmatpush1.msra.mxu0 0.0
    %598 = vmatprep.subr.mxu0 0.0
    %599 = vmatpush1.msra.mxu0 0.0
    %600 = vmatprep.subr.mxu0 0.0
    %601 = vmatpush1.msra.mxu0 0.0
    %602 = vmatprep.subr.mxu0 0.0
    %603 = vmatpush1.msra.mxu0 0.0
    %604 = vmatprep.subr.mxu0 0.0
    %605 = vmatpush1.msra.mxu0 0.0
    %606 = vmatprep.subr.mxu0 0.0
    %607 = vmatpush1.msra.mxu0 %v35
    %608 = vmatprep.subr.mxu0 0.0
    %609 = vmatpush1.msra.mxu0 %v34
    %610 = vmatprep.subr.mxu0 0.0
    %611 = vmatpush1.msra.mxu0 %v33
    %612 = vmatprep.subr.mxu0 0.0
    %613 = vmatpush1.msra.mxu0 %v32
    %614 = vmatprep.subr.mxu0 0.0
    %615 = vmatpush2.msra.mxu0 0.0
    %616 = vmatprep.subr.mxu0 0.0
    %617 = vmatpush2.msra.mxu0 0.0
    %618 = vmatprep.subr.mxu0 0.0
    %619 = vmatpush2.msra.mxu0 0.0
    %620 = vmatprep.subr.mxu0 0.0
    %621 = vmatpush2.msra.mxu0 0.0
    %622 = vmatprep.subr.mxu0 0.0
    %623 = vmatpush2.msra.mxu0 0.0
    %624 = vmatprep.subr.mxu0 0.0
    %625 = vmatpush2.msra.mxu0 0.0
    %626 = vmatprep.subr.mxu0 0.0
    %627 = vmatpush2.msra.mxu0 0.0
    %628 = vmatprep.subr.mxu0 0.0
    %629 = vmatpush2.msra.mxu0 0.0
    %630 = vmatprep.subr.mxu0 0.0
    %631 = vmatpush2.msra.mxu0 0.0
    %632 = vmatprep.subr.mxu0 0.0
    %633 = vmatpush2.msra.mxu0 0.0
    %634 = vmatprep.subr.mxu0 0.0
    %635 = vmatpush2.msra.mxu0 0.0
    %636 = vmatprep.subr.mxu0 0.0
    %637 = vmatpush2.msra.mxu0 0.0
    %638 = vmatprep.subr.mxu0 0.0
    %639 = vmatpush2.msra.mxu0 0.0
    %640 = vmatprep.subr.mxu0 0.0
    %641 = vmatpush2.msra.mxu0 0.0
    %642 = vmatprep.subr.mxu0 0.0
    %643 = vmatpush2.msra.mxu0 0.0
    %644 = vmatprep.subr.mxu0 0.0
    %645 = vmatpush2.msra.mxu0 0.0
    %646 = vmatprep.mubr.f32.mxu0 0.0
    %647 = vmatmul.mubr.f32.gmra.mxu0 %v580
    %v648 = vpop.f32.mrf.mxu0
    %v649 = vadd.f32 0.0, %v648
    %v650 = vpop.f32.mrf.mxu0
    %651 = vdwg.mxu0
    %v652 = vadd.f32 %v578, %v649
    %v653 = vmax.f32 %v652, 0.0
    %654 = vst.msk [vmem:[#allocation3 + $0x6] sm:$0x1] %vm191, %v653
    %v655 = vld [vmem:[#allocation2 + $0x7] sm:$0x1]
    %v657 = vsel %vm113, %v653, 0
    %659 = vmatprep.subr.mxu0 0.0
    %660 = vmatpush1.msra.mxu0 0.0
    %661 = vmatprep.subr.mxu0 0.0
    %662 = vmatpush1.msra.mxu0 0.0
    %663 = vmatprep.subr.mxu0 0.0
    %664 = vmatpush1.msra.mxu0 0.0
    %665 = vmatprep.subr.mxu0 0.0
    %666 = vmatpush1.msra.mxu0 0.0
    %667 = vmatprep.subr.mxu0 0.0
    %668 = vmatpush1.msra.mxu0 0.0
    %669 = vmatprep.subr.mxu0 0.0
    %670 = vmatpush1.msra.mxu0 0.0
    %671 = vmatprep.subr.mxu0 0.0
    %672 = vmatpush1.msra.mxu0 0.0
    %673 = vmatprep.subr.mxu0 0.0
    %674 = vmatpush1.msra.mxu0 0.0
    %675 = vmatprep.subr.mxu0 0.0
    %676 = vmatpush1.msra.mxu0 0.0
    %677 = vmatprep.subr.mxu0 0.0
    %678 = vmatpush1.msra.mxu0 0.0
    %679 = vmatprep.subr.mxu0 0.0
    %680 = vmatpush1.msra.mxu0 0.0
    %681 = vmatprep.subr.mxu0 0.0
    %682 = vmatpush1.msra.mxu0 0.0
    %683 = vmatprep.subr.mxu0 0.0
    %684 = vmatpush1.msra.mxu0 %v35
    %685 = vmatprep.subr.mxu0 0.0
    %686 = vmatpush1.msra.mxu0 %v34
    %687 = vmatprep.subr.mxu0 0.0
    %688 = vmatpush1.msra.mxu0 %v33
    %689 = vmatprep.subr.mxu0 0.0
    %690 = vmatpush1.msra.mxu0 %v32
    %691 = vmatprep.subr.mxu0 0.0
    %692 = vmatpush2.msra.mxu0 0.0
    %693 = vmatprep.subr.mxu0 0.0
    %694 = vmatpush2.msra.mxu0 0.0
    %695 = vmatprep.subr.mxu0 0.0
    %696 = vmatpush2.msra.mxu0 0.0
    %697 = vmatprep.subr.mxu0 0.0
    %698 = vmatpush2.msra.mxu0 0.0
    %699 = vmatprep.subr.mxu0 0.0
    %700 = vmatpush2.msra.mxu0 0.0
    %701 = vmatprep.subr.mxu0 0.0
    %702 = vmatpush2.msra.mxu0 0.0
    %703 = vmatprep.subr.mxu0 0.0
    %704 = vmatpush2.msra.mxu0 0.0
    %705 = vmatprep.subr.mxu0 0.0
    %706 = vmatpush2.msra.mxu0 0.0
    %707 = vmatprep.subr.mxu0 0.0
    %708 = vmatpush2.msra.mxu0 0.0
    %709 = vmatprep.subr.mxu0 0.0
    %710 = vmatpush2.msra.mxu0 0.0
    %711 = vmatprep.subr.mxu0 0.0
    %712 = vmatpush2.msra.mxu0 0.0
    %713 = vmatprep.subr.mxu0 0.0
    %714 = vmatpush2.msra.mxu0 0.0
    %715 = vmatprep.subr.mxu0 0.0
    %716 = vmatpush2.msra.mxu0 0.0
    %717 = vmatprep.subr.mxu0 0.0
    %718 = vmatpush2.msra.mxu0 0.0
    %719 = vmatprep.subr.mxu0 0.0
    %720 = vmatpush2.msra.mxu0 0.0
    %721 = vmatprep.subr.mxu0 0.0
    %722 = vmatpush2.msra.mxu0 0.0
    %723 = vmatprep.mubr.f32.mxu0 0.0
    %724 = vmatmul.mubr.f32.gmra.mxu0 %v657
    %v725 = vpop.f32.mrf.mxu0
    %v726 = vadd.f32 0.0, %v725
    %v727 = vpop.f32.mrf.mxu0
    %728 = vdwg.mxu0
    %v729 = vadd.f32 %v655, %v726
    %v730 = vmax.f32 %v729, 0.0
    %731 = vst.msk [vmem:[#allocation3 + $0x7] sm:$0x1] %vm191, %v730
    %v732 = vld [vmem:[#allocation3] sm:$0xff]
    %v733 = vld [vmem:[%s3] sm:$0xff]
    %v734 = vld [vmem:[%s3 + $0x8] sm:$0xff]
    %v735 = vld [vmem:[%s3 + $0x10] sm:$0xff]
    %v736 = vld [vmem:[%s3 + $0x18] sm:$0xff]
    %v738 = vsel %vm113, %v732, 0
    %740 = vmatprep.subr.mxu0 0.0
    %741 = vmatpush1.msra.mxu0 0.0
    %742 = vmatprep.subr.mxu0 0.0
    %743 = vmatpush1.msra.mxu0 0.0
    %744 = vmatprep.subr.mxu0 0.0
    %745 = vmatpush1.msra.mxu0 0.0
    %746 = vmatprep.subr.mxu0 0.0
    %747 = vmatpush1.msra.mxu0 0.0
    %748 = vmatprep.subr.mxu0 0.0
    %749 = vmatpush1.msra.mxu0 0.0
    %750 = vmatprep.subr.mxu0 0.0
    %751 = vmatpush1.msra.mxu0 0.0
    %752 = vmatprep.subr.mxu0 0.0
    %753 = vmatpush1.msra.mxu0 0.0
    %754 = vmatprep.subr.mxu0 0.0
    %755 = vmatpush1.msra.mxu0 0.0
    %756 = vmatprep.subr.mxu0 0.0
    %757 = vmatpush1.msra.mxu0 0.0
    %758 = vmatprep.subr.mxu0 0.0
    %759 = vmatpush1.msra.mxu0 0.0
    %760 = vmatprep.subr.mxu0 0.0
    %761 = vmatpush1.msra.mxu0 0.0
    %762 = vmatprep.subr.mxu0 0.0
    %763 = vmatpush1.msra.mxu0 0.0
    %764 = vmatprep.subr.mxu0 0.0
    %765 = vmatpush1.msra.mxu0 %v736
    %766 = vmatprep.subr.mxu0 0.0
    %767 = vmatpush1.msra.mxu0 %v735
    %768 = vmatprep.subr.mxu0 0.0
    %769 = vmatpush1.msra.mxu0 %v734
    %770 = vmatprep.subr.mxu0 0.0
    %771 = vmatpush1.msra.mxu0 %v733
    %772 = vmatprep.subr.mxu0 0.0
    %773 = vmatpush2.msra.mxu0 0.0
    %774 = vmatprep.subr.mxu0 0.0
    %775 = vmatpush2.msra.mxu0 0.0
    %776 = vmatprep.subr.mxu0 0.0
    %777 = vmatpush2.msra.mxu0 0.0
    %778 = vmatprep.subr.mxu0 0.0
    %779 = vmatpush2.msra.mxu0 0.0
    %780 = vmatprep.subr.mxu0 0.0
    %781 = vmatpush2.msra.mxu0 0.0
    %782 = vmatprep.subr.mxu0 0.0
    %783 = vmatpush2.msra.mxu0 0.0
    %784 = vmatprep.subr.mxu0 0.0
    %785 = vmatpush2.msra.mxu0 0.0
    %786 = vmatprep.subr.mxu0 0.0
    %787 = vmatpush2.msra.mxu0 0.0
    %788 = vmatprep.subr.mxu0 0.0
    %789 = vmatpush2.msra.mxu0 0.0
    %790 = vmatprep.subr.mxu0 0.0
    %791 = vmatpush2.msra.mxu0 0.0
    %792 = vmatprep.subr.mxu0 0.0
    %793 = vmatpush2.msra.mxu0 0.0
    %794 = vmatprep.subr.mxu0 0.0
    %795 = vmatpush2.msra.mxu0 0.0
    %796 = vmatprep.subr.mxu0 0.0
    %797 = vmatpush2.msra.mxu0 0.0
    %798 = vmatprep.subr.mxu0 0.0
    %799 = vmatpush2.msra.mxu0 0.0
    %800 = vmatprep.subr.mxu0 0.0
    %801 = vmatpush2.msra.mxu0 0.0
    %802 = vmatprep.subr.mxu0 0.0
    %803 = vmatpush2.msra.mxu0 0.0
    %804 = vmatprep.mubr.f32.mxu0 0.0
    %805 = vmatmul.mubr.f32.gmra.mxu0 %v738
    %v806 = vpop.f32.mrf.mxu0
    %v807 = vadd.f32 0.0, %v806
    %v808 = vpop.f32.mrf.mxu0
    %809 = vdwg.mxu0
    %vm810 = vcmask 64512
    %811 = vst.msk [vmem:[#allocation7] sm:$0xff] %vm810, %v807
    // Predicated region
    $region22: #{tpu_custom_call.1} parent=1 // pred_check
      _
    $region23: #{tpu_custom_call.1} parent=1 // pred_check_branch
      %813 = sbr.rel (0) target = $region25
    $region24: #{tpu_custom_call.1} parent=1 // pred_region
      %s815 = ssub.s32 128, 128
      %816 = vsyncadd [#allocation6], %s815
      %s818 = sshll.u32 [#allocation7], 4
      %s819 = int_to_ptr.vmem [resolvable:$true] %s818
      %821 = dma.vmem_to_hbm [thread:$0]  %s819, 128, %s4, [#allocation6]
    $region25: #{tpu_custom_call.1} parent=1 // pred_fallthru
      _
    // Predicated region
    $region26: #{tpu_custom_call.1} parent=1 // pred_check
      _
    $region27: #{tpu_custom_call.1} parent=1 // pred_check_branch
      %823 = sbr.rel (0) target = $region29
    $region28: #{tpu_custom_call.1} parent=1 // pred_region
      %824 = dma.done [#allocation6], 128
    $region29: #{tpu_custom_call.1} parent=1 // pred_fallthru
      _
    %825 = vsyncpa [#allocation5], 1
    %826 = vsyncpa [#allocation6], 1

</llo_original>
